<compile_context>
chip_gen: v7x
topology: tpu7x:2x2x1
jax: 0.10.0
libtpu: 0.0.40
codegen_flags: <defaults>
</compile_context>

<pallas_src>
import jax
import jax.numpy as jnp
from jax.experimental import pallas as pl
from jax.experimental.pallas import tpu as pltpu

LANE = 128


def _scale_kernel(s_ref, x_ref, o_ref):
    # s_ref: (1,) f32 scalar in SMEM; x_ref/o_ref: (block_rows, width) VMEM tiles.
    s = s_ref[0]
    o_ref[...] = (x_ref[...].astype(jnp.float32) * s).astype(o_ref.dtype)


def _choose_width(n):
    """Widest lane-dense width (multiple of 128) that divides n (n % 128 == 0)."""
    for w in (4096, 2048, 1024, 512, 256, 128):
        if n % w == 0:
            return w
    return LANE


def _scale_slab(slab, scale_f32, donate=False):
    """Run the scale kernel over a (rows, width) slab; width % 128 == 0."""
    rows, width = slab.shape
    itemsize = jnp.dtype(slab.dtype).itemsize
    # dtype-aware sublane granularity: 8 rows f32, 16 bf16, 32 int8/fp8.
    sub = max(8, 32 // max(itemsize, 1))

    # ~3 MiB per block per buffer: 2 bufs in + 2 bufs out ~= 12 MiB, under the
    # v5e 16 MiB scoped-VMEM default and comfortably under v6e/v7x budgets,
    # while keeping grid steps few (per-step overhead ~0.35 us).
    target_bytes = 3 << 20
    block_rows = max(sub, (target_bytes // (width * itemsize)) // sub * sub)

    slab_bytes = rows * width * itemsize
    num_blocks = -(-rows // block_rows)
    if slab_bytes > (2 << 20) and num_blocks < 2 and rows > sub:
        # v7x megacore: guarantee >= 2 balanced blocks so both TensorCores
        # stream; rounded up to the sublane multiple to stay a legal block.
        half_rows = -(-rows // 2)
        block_rows = max(sub, -(-half_rows // sub) * sub)
    if block_rows >= rows:
        block_rows = rows  # single full-extent block (small tensor)

    grid = (pl.cdiv(rows, block_rows),)

    block_bytes = block_rows * width * itemsize
    # 2x in + 2x out double-buffered, plus headroom; capped at 32 MiB so the
    # budget is valid on v7x (64 MiB physical / 32 MiB scoped default).
    vmem_limit = min(max(4 * block_bytes + (2 << 20), 16 << 20), 32 << 20)

    return pl.pallas_call(
        _scale_kernel,
        out_shape=jax.ShapeDtypeStruct((rows, width), slab.dtype),
        grid=grid,
        in_specs=[
            pl.BlockSpec(memory_space=pltpu.SMEM),                 # scalar scale (f32)
            pl.BlockSpec((block_rows, width), lambda i: (i, 0)),   # x block
        ],
        out_specs=pl.BlockSpec((block_rows, width), lambda i: (i, 0)),
        input_output_aliases=({1: 0} if donate else {}),
        compiler_params=pltpu.CompilerParams(
            dimension_semantics=("parallel",),
            vmem_limit_bytes=vmem_limit,
        ),
    )(scale_f32, slab)


def scale_forward(x, scale_param, donate=False):
    """x: any-shape float array (e.g. NCHW). scale_param: shape-(1,) f32 array."""
    orig_shape = x.shape
    orig_dtype = x.dtype
    n = x.size
    if n == 0:
        return x

    scale_f32 = scale_param.astype(jnp.float32).reshape(1)
    flat = x.reshape(-1)

    aligned = (n // LANE) * LANE
    if aligned == 0:
        # Tiny tensor (< 128 elements): a kernel launch isn't worth it.
        out = (flat.astype(jnp.float32) * scale_f32[0]).astype(orig_dtype)
        return out.reshape(orig_shape)

    if aligned == n:
        # Common case: element count divisible by 128 -> zero extra copies.
        width = _choose_width(n)
        slab = flat.reshape(n // width, width)
        out_flat = _scale_slab(slab, scale_f32, donate=donate).reshape(-1)
    else:
        # Ragged tail (< 128 elems): kernel on the aligned prefix, plain
        # multiply on the tiny tail -- no full-tensor pad/slice round-trips.
        width = _choose_width(aligned)
        slab = flat[:aligned].reshape(aligned // width, width)
        out_prefix = _scale_slab(slab, scale_f32, donate=False).reshape(-1)
        tail = flat[aligned:]
        out_tail = (tail.astype(jnp.float32) * scale_f32[0]).astype(orig_dtype)
        out_flat = jnp.concatenate([out_prefix, out_tail])

    return out_flat.reshape(orig_shape)


class ScalePallas:
    """Mirrors torch Scale module: fixed (non-trainable) scalar parameter."""

    def __init__(self, scale=1.0):
        # nn.Parameter(torch.Tensor([scale]), requires_grad=False) -> f32 scalar
        self.scale = jnp.array([scale], dtype=jnp.float32)

    def set_scale(self, scale):
        # torch: self.scale.data *= scale
        self.scale = self.scale * scale

    def __call__(self, x, donate=False):
        return scale_forward(x, self.scale, donate=donate)


if __name__ == "__main__":
    key = jax.random.PRNGKey(0)

    mod = ScalePallas(scale=1.0)
    mod.set_scale(2.5)  # exercise set_scale; effective scale = 2.5

    # 1) NCHW feature-map shape (aligned path, single block).
    x = jax.random.normal(key, (2, 4, 16, 16), dtype=jnp.float32)
    y = mod(x)
    jax.block_until_ready(y)
    assert y.shape == x.shape and y.dtype == x.dtype
    assert jnp.max(jnp.abs(y - x * 2.5)) < 1e-6

    # 2) Larger slab (exercises the >=2-block split / multi-step pipeline).
    k1, k2, k3 = jax.random.split(key, 3)
    xl = jax.random.normal(k1, (8, 16, 64, 128), dtype=jnp.float32)  # 4 MiB
    yl = mod(xl)
    jax.block_until_ready(yl)
    assert yl.shape == xl.shape
    assert jnp.max(jnp.abs(yl - xl * 2.5)) < 1e-5

    # 3) Ragged size > 128 (aligned prefix via kernel + wrapper tail multiply).
    xr = jax.random.normal(k2, (3, 5, 17), dtype=jnp.float32)  # 255 elems
    yr = mod(xr)
    jax.block_until_ready(yr)
    assert yr.shape == xr.shape
    assert jnp.max(jnp.abs(yr - xr * 2.5)) < 1e-6

    # 4) Tiny tensor (< 128 elements) takes the pure-JAX path.
    xt = jax.random.normal(k3, (3, 5, 7), dtype=jnp.float32)  # 105 elems
    yt = mod(xt)
    jax.block_until_ready(yt)
    assert yt.shape == xt.shape
    assert jnp.max(jnp.abs(yt - xt * 2.5)) < 1e-6

    print("KERNEL_OK")
</pallas_src>

<mosaic_0001>
module attributes {stable_mosaic.version = 11 : i64} {
  func.func @_scale_kernel(%arg0: i32, %arg1: memref<1xf32, #tpu.memory_space<smem>>, %arg2: memref<1x2048xf32, #tpu.memory_space<vmem>>, %arg3: memref<1x2048xf32, #tpu.memory_space<vmem>>) attributes {dimension_semantics = [#tpu.dimension_semantics<parallel>], iteration_bounds = array<i64: 1>, scalar_prefetch = 0 : i64, scratch_operands = 0 : i64, tpu.core_type = #tpu.core_type<tc>, window_params = [{transform_indices = @transform_0, window_bounds = array<i64: 1>}, {transform_indices = @transform_1, window_bounds = array<i64: 1, 2048>}, {transform_indices = @transform_2, window_bounds = array<i64: 1, 2048>}]} {
    %c0 = arith.constant 0 : index
    %0 = memref.load %arg1[%c0] : memref<1xf32, #tpu.memory_space<smem>>
    %c0_0 = arith.constant 0 : index
    %c0_1 = arith.constant 0 : index
    %1 = vector.load %arg2[%c0_0, %c0_1] : memref<1x2048xf32, #tpu.memory_space<vmem>>, vector<1x2048xf32>
    %2 = vector.broadcast %0 : f32 to vector<1x2048xf32>
    %3 = arith.mulf %1, %2 : vector<1x2048xf32>
    %c0_2 = arith.constant 0 : index
    %c0_3 = arith.constant 0 : index
    %4 = vector.load %arg3[%c0_2, %c0_3] : memref<1x2048xf32, #tpu.memory_space<vmem>>, vector<1x2048xf32>
    tpu.vector_store %arg3[%c0_2, %c0_3], %3 {strides = array<i32>} : memref<1x2048xf32, #tpu.memory_space<vmem>>, vector<1x2048xf32>,
    return
  }
  func.func @transform_0(%arg0: i32) -> i32 {
    %c0_i32 = arith.constant 0 : i32
    %c0_i32_0 = arith.constant 0 : i32
    return %c0_i32 : i32
  }
  func.func @transform_1(%arg0: i32) -> (i32, i32) {
    %c0_i32 = arith.constant 0 : i32
    %c0_i32_0 = arith.constant 0 : i32
    return %arg0, %c0_i32 : i32, i32
  }
  func.func @transform_2(%arg0: i32) -> (i32, i32) {
    %c0_i32 = arith.constant 0 : i32
    %c0_i32_0 = arith.constant 0 : i32
    return %arg0, %c0_i32 : i32, i32
  }
}

</mosaic_0001>

<llo_original>
// kernel: tpu_custom_call.1
$region0: #{tpu_custom_call.1}
  #allocation0 [shape = 'u32[]', space=smem, size = 0x4, offset = 0x4, fixed_abs, tag = 'smem constant byte address 0x4 - core index']
  #allocation1 [shape = 'u32[144,128]{1,0:T(1,128)}', space=vmem, size = 0x12000, scoped, tag = 'internal scratch']
  #allocation2 [shape = 'f32[1]{0:T(128)S(6)}', space=smem, size = 0x200, scoped, tag = 'scoped memory for tpu_custom_call.1']
  %s0 = inlined_call_operand.<no memory space> [shape: f32[1], index: 0, kind: input, shape index: {}]
  %s1 = inlined_call_operand.hbm [shape: f32[1,2048], index: 1, kind: input, shape index: {}]
  %s2 = inlined_call_operand.hbm [shape: f32[1,2048], index: 2, kind: output, shape index: {}]
  %s3 = sld [smem:[#allocation0]]
  $region22: #{tpu_custom_call.1} parent=0
    _
  %s5 = ssub.s32 1, %s3
  %s6 = scalar_select 0, %s5, %s3
  %7 = sst [smem:[#allocation2]] %s0
  $region1: #{tpu_custom_call.1} parent=0
    #allocation3 [shape = 'u8[8192]{0}', space=vmem, size = 0x2000, scoped, tag = 'input window, operand 1, single buffered']
    #allocation4 [shape = 's32[1]{0}', space=sflag, size = 0x4, scoped, tag = 'scoped memory for tpu_custom_call.1']
    #allocation5 [shape = 's32[1]{0}', space=sflag, size = 0x4, scoped, tag = 'scoped memory for tpu_custom_call.1']
    #allocation6 [shape = 'u8[8192]{0}', space=vmem, size = 0x2000, scoped, tag = 'output window, operand 0, single buffered']
    %8 = vsyncpa [#allocation4], 0
    %9 = vsyncpa [#allocation5], 0
    // Predicated region
    $region2: #{tpu_custom_call.1} parent=1 // pred_check
      _
    $region3: #{tpu_custom_call.1} parent=1 // pred_check_branch
      %11 = sbr.rel (0) target = $region5
    $region4: #{tpu_custom_call.1} parent=1 // pred_region
      _
    $region5: #{tpu_custom_call.1} parent=1 // pred_fallthru
      _
    // Predicated region
    $region6: #{tpu_custom_call.1} parent=1 // pred_check
      _
    $region7: #{tpu_custom_call.1} parent=1 // pred_check_branch
      %13 = sbr.rel (0) target = $region9
    $region8: #{tpu_custom_call.1} parent=1 // pred_region
      %s15 = ssub.s32 256, 256
      %16 = vsyncadd [#allocation4], %s15
      %s18 = sshll.u32 [#allocation3], 4
      %s19 = int_to_ptr.vmem [resolvable:$true] %s18
      %21 = dma.hbm_to_vmem [thread:$0]  %s1, 256, %s19, [#allocation4]
    $region9: #{tpu_custom_call.1} parent=1 // pred_fallthru
      _
    // Predicated region
    $region10: #{tpu_custom_call.1} parent=1 // pred_check
      _
    $region11: #{tpu_custom_call.1} parent=1 // pred_check_branch
      %23 = sbr.rel (0) target = $region13
    $region12: #{tpu_custom_call.1} parent=1 // pred_region
      %24 = dma.done [#allocation4], 256
    $region13: #{tpu_custom_call.1} parent=1 // pred_fallthru
      _
    %s25 = sld [smem:[#allocation2]]
    %v26 = vld [vmem:[#allocation3] sm:$0xff]
    %v27 = vld [vmem:[#allocation3 + $0x8] sm:$0xff]
    %v28 = vstv %s25
    %v29 = vmul.f32 %v26, %v28
    %v30 = vmul.f32 %v27, %v28
    %31 = vst [vmem:[#allocation6] sm:$0xff] %v29
    %32 = vst [vmem:[#allocation6 + $0x8] sm:$0xff] %v30
    // Predicated region
    $region14: #{tpu_custom_call.1} parent=1 // pred_check
      _
    $region15: #{tpu_custom_call.1} parent=1 // pred_check_branch
      %34 = sbr.rel (0) target = $region17
    $region16: #{tpu_custom_call.1} parent=1 // pred_region
      %s36 = ssub.s32 256, 256
      %37 = vsyncadd [#allocation5], %s36
      %s39 = sshll.u32 [#allocation6], 4
      %s40 = int_to_ptr.vmem [resolvable:$true] %s39
      %42 = dma.vmem_to_hbm [thread:$0]  %s40, 256, %s2, [#allocation5]
    $region17: #{tpu_custom_call.1} parent=1 // pred_fallthru
      _
    // Predicated region
    $region18: #{tpu_custom_call.1} parent=1 // pred_check
      _
    $region19: #{tpu_custom_call.1} parent=1 // pred_check_branch
      %44 = sbr.rel (0) target = $region21
    $region20: #{tpu_custom_call.1} parent=1 // pred_region
      %45 = dma.done [#allocation5], 256
    $region21: #{tpu_custom_call.1} parent=1 // pred_fallthru
      _
    %46 = vsyncpa [#allocation4], 1
    %47 = vsyncpa [#allocation5], 1

</llo_original>
